<compile_context>
chip_gen: v6e
topology: v6e:2x2x1
jax: 0.10.0
libtpu: 0.0.40
codegen_flags: <defaults>
</compile_context>

<pallas_src>
import jax
import jax.numpy as jnp
from jax.experimental import pallas as pl
from jax.experimental.pallas import tpu as pltpu


# ----------------------------------------------------------------------------
# Kernels
# ----------------------------------------------------------------------------
def _amax_single_block_kernel(x_ref, o_ref):
    # x_ref: (B, M, N) whole array ; o_ref: (M, 1)
    x = x_ref[...]
    folded = jnp.max(x, axis=0)                                  # (M, N)  fold leading dim (VPU)
    o_ref[...] = jnp.max(folded, axis=-1, keepdims=True)         # (M, 1)  one cross-lane reduce


def _amax_tiled_kernel(x_ref, o_ref, acc_ref):
    # x_ref: (1, tm, tn) ; o_ref: (tm, 1) resident across (b, n) ; acc_ref: (tm, tn) VMEM scratch
    b = pl.program_id(1)
    n = pl.program_id(2)

    @pl.when(jnp.logical_and(b == 0, n == 0))
    def _init():
        acc_ref[...] = jnp.full_like(acc_ref, -jnp.inf)

    # Elementwise running max on the VPU every step (no per-step XLU reduce).
    acc_ref[...] = jnp.maximum(acc_ref[...], x_ref[0])

    @pl.when(jnp.logical_and(b == pl.num_programs(1) - 1,
                             n == pl.num_programs(2) - 1))
    def _finalize():
        # Single cross-lane reduce per output tile, only at the end of the reduction.
        o_ref[...] = jnp.max(acc_ref[...], axis=-1, keepdims=True).astype(o_ref.dtype)


# ----------------------------------------------------------------------------
# Wrapper
# ----------------------------------------------------------------------------
def _pick_tile(dim: int, base: int, max_tile: int) -> int:
    """Largest divisor of `dim` that is a multiple of `base` and <= max_tile; else full extent."""
    if dim <= max_tile:
        return dim
    t = max_tile - (max_tile % base)
    while t >= base:
        if dim % t == 0:
            return t
        t -= base
    return dim  # fallback: full extent (always legal)


_SMALL_BYTES = 2 * 1024 * 1024  # below this, one grid step is strictly faster


def reduce_amax_multi_dim(a: jax.Array) -> jax.Array:
    """amax over axes (0, 2) of a (B, M, N) float32 array -> shape (M,)."""
    B, M, N = a.shape

    if a.size * a.dtype.itemsize <= _SMALL_BYTES:
        # Tiny-input fast path: single block, single grid step.
        out = pl.pallas_call(
            _amax_single_block_kernel,
            out_shape=jax.ShapeDtypeStruct((M, 1), a.dtype),
            grid_spec=pltpu.PrefetchScalarGridSpec(
                num_scalar_prefetch=0,
                grid=(1,),
                in_specs=[pl.BlockSpec((B, M, N), lambda i: (0, 0, 0))],
                out_specs=pl.BlockSpec((M, 1), lambda i: (0, 0)),
            ),
            compiler_params=pltpu.CompilerParams(
                dimension_semantics=("arbitrary",),
            ),
        )(a)
        return out.reshape(M)

    # Tiled streaming path: ~<=1 MiB f32 tiles (tm<=256 sublane-aligned, tn<=1024 lane-aligned).
    tm = _pick_tile(M, base=8, max_tile=256)
    tn = _pick_tile(N, base=128, max_tile=1024)
    grid = (M // tm, B, N // tn)

    out = pl.pallas_call(
        _amax_tiled_kernel,
        out_shape=jax.ShapeDtypeStruct((M, 1), a.dtype),
        grid_spec=pltpu.PrefetchScalarGridSpec(
            num_scalar_prefetch=0,
            grid=grid,
            in_specs=[pl.BlockSpec((1, tm, tn), lambda m, b, n: (b, m, n))],
            out_specs=pl.BlockSpec((tm, 1), lambda m, b, n: (m, 0)),
            scratch_shapes=[pltpu.VMEM((tm, tn), jnp.float32)],
        ),
        compiler_params=pltpu.CompilerParams(
            # M is independent -> megacore-shardable on v7x; B and N are the reduction.
            dimension_semantics=("parallel", "arbitrary", "arbitrary"),
            # 2 x 1 MiB input buffers + 1 MiB scratch + tiny output: safe on v5e/v6e/v7x.
            vmem_limit_bytes=32 * 1024 * 1024,
        ),
    )(a)
    return out.reshape(M)


# ----------------------------------------------------------------------------
# Self-test
# ----------------------------------------------------------------------------
if __name__ == "__main__":
    key = jax.random.PRNGKey(0)

    # rank-3 float32 shapes consistent with ([-1, -1, -1], torch.float32)
    test_shapes = [
        (4, 16, 32),      # tiny -> single-block fast path
        (4, 512, 1024),   # tiled: M split in 2 parallel blocks, reduce over B=4
        (2, 256, 2048),   # tiled: N split in 2 reduction blocks, reduce over B=2
    ]

    for shape in test_shapes:
        key, sub = jax.random.split(key)
        x = jax.random.normal(sub, shape, dtype=jnp.float32)

        result = reduce_amax_multi_dim(x)
        result = jax.block_until_ready(result)

        expected = jnp.max(x, axis=(0, 2))  # torch.ops.aten.amax(a, (0, 2))
        assert result.shape == (shape[1],), (result.shape, shape)
        assert jnp.allclose(result, expected), (shape, result, expected)

    print("KERNEL_OK")
</pallas_src>

<mosaic_0001>
module attributes {stable_mosaic.version = 11 : i64} {
  func.func @_amax_single_block_kernel(%arg0: i32, %arg1: memref<4x16x32xf32, #tpu.memory_space<vmem>>, %arg2: memref<16x1xf32, #tpu.memory_space<vmem>>) attributes {dimension_semantics = [#tpu.dimension_semantics<arbitrary>], iteration_bounds = array<i64: 1>, scalar_prefetch = 0 : i64, scratch_operands = 0 : i64, tpu.core_type = #tpu.core_type<tc>, window_params = [{pipeline_mode = #tpu.pipeline_mode<synchronous>, transform_indices = @transform_0, window_bounds = array<i64: 4, 16, 32>}, {pipeline_mode = #tpu.pipeline_mode<synchronous>, transform_indices = @transform_1, window_bounds = array<i64: 16, 1>}]} {
    %c0 = arith.constant 0 : index
    %c0_0 = arith.constant 0 : index
    %c0_1 = arith.constant 0 : index
    %0 = vector.load %arg1[%c0, %c0_0, %c0_1] : memref<4x16x32xf32, #tpu.memory_space<vmem>>, vector<4x16x32xf32>
    %cst = arith.constant dense<0xFF800000> : vector<16x32xf32>
    %1 = vector.multi_reduction <maximumf>, %0, %cst [0] : vector<4x16x32xf32> to vector<16x32xf32>
    %cst_2 = arith.constant dense<0xFF800000> : vector<16xf32>
    %2 = vector.multi_reduction <maximumf>, %1, %cst_2 [1] : vector<16x32xf32> to vector<16xf32>
    %3 = vector.shape_cast %2 : vector<16xf32> to vector<16x1xf32>
    %c0_3 = arith.constant 0 : index
    %c0_4 = arith.constant 0 : index
    %4 = vector.load %arg2[%c0_3, %c0_4] : memref<16x1xf32, #tpu.memory_space<vmem>>, vector<16x1xf32>
    tpu.vector_store %arg2[%c0_3, %c0_4], %3 {strides = array<i32>} : memref<16x1xf32, #tpu.memory_space<vmem>>, vector<16x1xf32>,
    return
  }
  func.func @transform_0(%arg0: i32) -> (i32, i32, i32) {
    %c0_i32 = arith.constant 0 : i32
    %c0_i32_0 = arith.constant 0 : i32
    %c0_i32_1 = arith.constant 0 : i32
    %c0_i32_2 = arith.constant 0 : i32
    return %c0_i32, %c0_i32_0, %c0_i32_1 : i32, i32, i32
  }
  func.func @transform_1(%arg0: i32) -> (i32, i32) {
    %c0_i32 = arith.constant 0 : i32
    %c0_i32_0 = arith.constant 0 : i32
    %c0_i32_1 = arith.constant 0 : i32
    return %c0_i32, %c0_i32_0 : i32, i32
  }
}

</mosaic_0001>

<llo_original>
// kernel: tpu_custom_call.1
$region0: #{tpu_custom_call.1}
  #allocation0 [shape = 'u32[]', space=smem, size = 0x4, offset = 0x4, fixed_abs, tag = 'smem constant byte address 0x4 - core index']
  #allocation1 [shape = 'u32[144,128]{1,0:T(1,128)}', space=vmem, size = 0x12000, scoped, tag = 'internal scratch']
  %s0 = inlined_call_operand.hbm [shape: f32[4,16,32], index: 0, kind: input, shape index: {}]
  %s1 = inlined_call_operand.vmem [shape: f32[16,1], index: 1, kind: output, shape index: {}]
  %s2 = sld [smem:[#allocation0]]
  $region18: #{tpu_custom_call.1} parent=0
    _
  %s4 = ssub.s32 1, %s2
  %s5 = scalar_select 0, %s4, %s2
  $region1: #{tpu_custom_call.1} parent=0
    #allocation2 [shape = 'u8[32768]{0}', space=vmem, size = 0x8000, scoped, tag = 'input window, operand 0, single buffered']
    #allocation3 [shape = 's32[1]{0}', space=sflag, size = 0x4, scoped, tag = 'scoped memory for tpu_custom_call.1']
    %6 = vsyncpa [#allocation3], 0
    // Predicated region
    $region2: #{tpu_custom_call.1} parent=1 // pred_check
      _
    $region3: #{tpu_custom_call.1} parent=1 // pred_check_branch
      %8 = sbr.rel (0) target = $region5
    $region4: #{tpu_custom_call.1} parent=1 // pred_region
      %s10 = ssub.s32 1024, 1024
      %11 = vsyncadd [#allocation3], %s10
      %s12 = sshll.u32 [#allocation2], 4
      %s13 = int_to_ptr.vmem [resolvable:$true] %s12
      %18 = dma.hbm_to_vmem [thread:$0]  %s0, 1024, %s13, [#allocation3], 128, 128, 8
    $region5: #{tpu_custom_call.1} parent=1 // pred_fallthru
      _
    // Predicated region
    $region6: #{tpu_custom_call.1} parent=1 // pred_check
      _
    $region7: #{tpu_custom_call.1} parent=1 // pred_check_branch
      %20 = sbr.rel (0) target = $region9
    $region8: #{tpu_custom_call.1} parent=1 // pred_region
      %21 = dma.done [#allocation3], 1024
    $region9: #{tpu_custom_call.1} parent=1 // pred_fallthru
      _
    %v22 = vld [vmem:[#allocation2] sm:$0xff]
    %v23 = vld [vmem:[#allocation2 + $0x8] sm:$0xff]
    %v24 = vld [vmem:[#allocation2 + $0x10] sm:$0xff]
    %v25 = vld [vmem:[#allocation2 + $0x18] sm:$0xff]
    %v26 = vld [vmem:[#allocation2 + $0x20] sm:$0xff]
    %v27 = vld [vmem:[#allocation2 + $0x28] sm:$0xff]
    %v28 = vld [vmem:[#allocation2 + $0x30] sm:$0xff]
    %v29 = vld [vmem:[#allocation2 + $0x38] sm:$0xff]
    %vm30 = vcmask 261120
    %v31 = vsel %vm30, %v22, -inf
    %v32 = vsel %vm30, %v24, -inf
    %v33 = vsel %vm30, %v26, -inf
    %v34 = vmax.f32 %v31, %v33
    %v35 = vsel %vm30, %v28, -inf
    %v36 = vmax.f32 %v32, %v35
    %v37 = vmax.f32 %v34, %v36
    %v38 = vsel %vm30, %v23, -inf
    %v39 = vsel %vm30, %v25, -inf
    %v40 = vsel %vm30, %v27, -inf
    %v41 = vmax.f32 %v38, %v40
    %v42 = vsel %vm30, %v29, -inf
    %v43 = vmax.f32 %v39, %v42
    %v44 = vmax.f32 %v41, %v43
    %v45 = vsel %vm30, %v37, -inf
    %46 = vmax.xlane.f32.xlu0 %v45
    %v47 = vpop.xlane.xlu0 %46
    %v48 = vsel %vm30, %v44, -inf
    %49 = vmax.xlane.f32.xlu0 %v48
    %v50 = vpop.xlane.xlu0 %49
    %vm51 = vcmask 7168
    %52 = vst.msk [vmem:[%s1] sm:$0xff] %vm51, %v47
    %53 = vst.msk [vmem:[%s1 + $0x8] sm:$0xff] %vm51, %v50
    // Predicated region
    $region10: #{tpu_custom_call.1} parent=1 // pred_check
      _
    $region11: #{tpu_custom_call.1} parent=1 // pred_check_branch
      %55 = sbr.rel (0) target = $region13
    $region12: #{tpu_custom_call.1} parent=1 // pred_region
      _
    $region13: #{tpu_custom_call.1} parent=1 // pred_fallthru
      _
    // Predicated region
    $region14: #{tpu_custom_call.1} parent=1 // pred_check
      _
    $region15: #{tpu_custom_call.1} parent=1 // pred_check_branch
      %57 = sbr.rel (0) target = $region17
    $region16: #{tpu_custom_call.1} parent=1 // pred_region
      _
    $region17: #{tpu_custom_call.1} parent=1 // pred_fallthru
      _
    %58 = vsyncpa [#allocation3], 1

</llo_original>
